<compile_context>
chip_gen: v6e
topology: v6e:2x2x1
jax: 0.10.0
libtpu: 0.0.40
codegen_flags: <defaults>
</compile_context>

<pallas_src>
import functools

import jax
import jax.numpy as jnp
from jax import lax
from jax.experimental import pallas as pl
from jax.experimental.pallas import tpu as pltpu


def _ce_label_smooth_kernel(x_ref, t_ref, out_ref, *, epsilon: float, total_b: int):
    """Per-block partial of sum_rows[ lse - (1-eps)*x_t - (eps/K)*sum_x ]."""
    x = x_ref[...].astype(jnp.float32)      # (tb, K) — compute in f32 even for bf16 input
    t = t_ref[...]                          # (tb, 1) int32 class indices
    tb, k = x.shape

    # Row-wise stable logsumexp pieces (XLU reduces + a single EUP exp pass).
    m = jnp.max(x, axis=-1, keepdims=True)                          # (tb, 1)
    sum_exp = jnp.sum(jnp.exp(x - m), axis=-1, keepdims=True)       # (tb, 1)
    lse = m + jnp.log(sum_exp)                                      # (tb, 1)
    sum_x = jnp.sum(x, axis=-1, keepdims=True)                      # (tb, 1)

    # x[row, target[row]] without a gather: lane-iota compare + row reduce.
    cls_idx = lax.broadcasted_iota(jnp.int32, (tb, k), 1)
    x_t = jnp.sum(jnp.where(cls_idx == t, x, 0.0), axis=-1, keepdims=True)

    # sum_j smoothed_j == 1, so:  -sum_j smoothed_j*(x_j - lse)
    #                           = lse - (1-eps)*x_t - (eps/K)*sum_x
    loss_rows = lse - (1.0 - epsilon) * x_t - (epsilon / k) * sum_x  # (tb, 1)

    # Mask rows beyond the true batch size (last partial block reads padding).
    row0 = pl.program_id(0) * tb
    row_idx = lax.broadcasted_iota(jnp.int32, (tb, 1), 0) + row0
    loss_rows = jnp.where(row_idx < total_b, loss_rows, 0.0)

    partial = jnp.sum(loss_rows)
    # Lane-dense (1, 128) store of this block's partial sum (read lane 0 outside).
    out_ref[...] = jnp.full(out_ref.shape, partial, dtype=jnp.float32)


def _choose_tile_b(b: int, k: int, itemsize: int) -> int:
    """Largest sublane-aligned batch tile with 2 x tile x K x bytes <= ~12 MiB.

    12 MiB of double-buffered logits stays inside the default scoped-VMEM budget
    on v5e (16 MiB) and leaves ample headroom on v6e/v7x.
    """
    per_buffer_budget = 6 * 1024 * 1024
    max_rows = max(8, per_buffer_budget // max(1, k * itemsize))
    tile = min(b, 1024, max_rows)
    if tile < b:
        tile = max(8, (tile // 8) * 8)   # keep sublane (8) alignment when tiling
    return tile


def cross_entropy_loss(inputs, targets, *, epsilon=0.1, label_smooth=True, tile_b=None):
    """inputs: (B, K) float32/bfloat16 logits; targets: (B,) int class indices."""
    eps = float(epsilon) if label_smooth else 0.0
    b, k = inputs.shape
    targets_2d = targets.astype(jnp.int32).reshape(b, 1)

    if tile_b is None:
        tile_b = _choose_tile_b(b, k, jnp.dtype(inputs.dtype).itemsize)
    tile_b = min(tile_b, b)
    num_blocks = pl.cdiv(b, tile_b)

    partials = pl.pallas_call(
        functools.partial(_ce_label_smooth_kernel, epsilon=eps, total_b=b),
        out_shape=jax.ShapeDtypeStruct((num_blocks, 128), jnp.float32),
        grid=(num_blocks,),
        in_specs=[
            pl.BlockSpec((tile_b, k), lambda i: (i, 0)),   # logits tile (lane = classes)
            pl.BlockSpec((tile_b, 1), lambda i: (i, 0)),   # target indices tile
        ],
        out_specs=pl.BlockSpec((1, 128), lambda i: (i, 0)),
        compiler_params=pltpu.CompilerParams(
            dimension_semantics=("parallel",),             # blocks are independent
            vmem_limit_bytes=48 * 1024 * 1024,
        ),
    )(inputs, targets_2d)

    # Final tiny reduction + division by the TOTAL batch size.
    return jnp.sum(partials[:, 0]) / b


def _reference(inputs, targets, epsilon=0.1):
    # Pure-JAX reference matching the PyTorch module semantics.
    logp = jax.nn.log_softmax(inputs.astype(jnp.float32), axis=1)
    k = inputs.shape[1]
    onehot = jax.nn.one_hot(targets, k, dtype=jnp.float32)
    smoothed = (1.0 - epsilon) * onehot + epsilon / k
    return jnp.sum(jnp.mean(-smoothed * logp, axis=0))


if __name__ == "__main__":
    key = jax.random.PRNGKey(0)
    k_x, k_t, k_x2, k_t2 = jax.random.split(key, 4)

    # --- Test 1: small f32 case (single block) ---
    batch, num_classes = 8, 32
    x = jax.random.normal(k_x, (batch, num_classes), dtype=jnp.float32)
    t = jax.random.randint(k_t, (batch,), 0, num_classes, dtype=jnp.int32)

    loss = cross_entropy_loss(x, t, epsilon=0.1, label_smooth=True)
    loss = jax.block_until_ready(loss)
    ref = _reference(x, t, epsilon=0.1)
    assert jnp.allclose(loss, ref, atol=1e-5, rtol=1e-5), (loss, ref)

    # --- Test 2: multi-block grid + partial last block (masking path) ---
    batch2, num_classes2 = 37, 64
    x2 = jax.random.normal(k_x2, (batch2, num_classes2), dtype=jnp.float32)
    t2 = jax.random.randint(k_t2, (batch2,), 0, num_classes2, dtype=jnp.int32)

    loss2 = cross_entropy_loss(x2, t2, epsilon=0.1, label_smooth=True, tile_b=16)
    loss2 = jax.block_until_ready(loss2)
    ref2 = _reference(x2, t2, epsilon=0.1)
    assert jnp.allclose(loss2, ref2, atol=1e-5, rtol=1e-5), (loss2, ref2)

    # --- Test 3: bf16 logits at the boundary (f32 math in-kernel) ---
    x_bf16 = x.astype(jnp.bfloat16)
    loss_bf16 = cross_entropy_loss(x_bf16, t, epsilon=0.1, label_smooth=True)
    loss_bf16 = jax.block_until_ready(loss_bf16)
    ref_bf16 = _reference(x_bf16, t, epsilon=0.1)   # reference upcasts the same bf16 values
    assert jnp.allclose(loss_bf16, ref_bf16, atol=1e-4, rtol=1e-4), (loss_bf16, ref_bf16)

    # --- Test 4: label_smooth=False reduces to plain cross entropy ---
    loss_ce = cross_entropy_loss(x, t, epsilon=0.1, label_smooth=False)
    loss_ce = jax.block_until_ready(loss_ce)
    ref_ce = _reference(x, t, epsilon=0.0)
    assert jnp.allclose(loss_ce, ref_ce, atol=1e-5, rtol=1e-5), (loss_ce, ref_ce)

    print("KERNEL_OK")
</pallas_src>

<mosaic_0001>
module attributes {stable_mosaic.version = 11 : i64} {
  func.func @_ce_label_smooth_kernel(%arg0: i32, %arg1: memref<8x32xf32, #tpu.memory_space<vmem>>, %arg2: memref<8x1xi32, #tpu.memory_space<vmem>>, %arg3: memref<1x128xf32, #tpu.memory_space<vmem>>) attributes {dimension_semantics = [#tpu.dimension_semantics<parallel>], iteration_bounds = array<i64: 1>, scalar_prefetch = 0 : i64, scratch_operands = 0 : i64, tpu.core_type = #tpu.core_type<tc>, window_params = [{transform_indices = @transform_0, window_bounds = array<i64: 8, 32>}, {transform_indices = @transform_1, window_bounds = array<i64: 8, 1>}, {transform_indices = @transform_2, window_bounds = array<i64: 1, 128>}]} {
    %c0 = arith.constant 0 : index
    %c0_0 = arith.constant 0 : index
    %0 = vector.load %arg1[%c0, %c0_0] : memref<8x32xf32, #tpu.memory_space<vmem>>, vector<8x32xf32>
    %c0_1 = arith.constant 0 : index
    %c0_2 = arith.constant 0 : index
    %1 = vector.load %arg2[%c0_1, %c0_2] : memref<8x1xi32, #tpu.memory_space<vmem>>, vector<8x1xi32>
    %cst = arith.constant dense<0xFF800000> : vector<8xf32>
    %2 = vector.multi_reduction <maximumf>, %0, %cst [1] : vector<8x32xf32> to vector<8xf32>
    %3 = vector.shape_cast %2 : vector<8xf32> to vector<8x1xf32>
    %4 = vector.broadcast %3 : vector<8x1xf32> to vector<8x32xf32>
    %5 = arith.subf %0, %4 : vector<8x32xf32>
    %6 = math.exp %5 : vector<8x32xf32>
    %cst_3 = arith.constant dense<0.000000e+00> : vector<8xf32>
    %7 = vector.multi_reduction <add>, %6, %cst_3 [1] : vector<8x32xf32> to vector<8xf32>
    %8 = vector.shape_cast %7 : vector<8xf32> to vector<8x1xf32>
    %9 = math.log %8 : vector<8x1xf32>
    %10 = arith.addf %3, %9 : vector<8x1xf32>
    %cst_4 = arith.constant dense<0.000000e+00> : vector<8xf32>
    %11 = vector.multi_reduction <add>, %0, %cst_4 [1] : vector<8x32xf32> to vector<8xf32>
    %12 = vector.shape_cast %11 : vector<8xf32> to vector<8x1xf32>
    %13 = tpu.iota {dimensions = array<i32: 1>} : vector<8x32xi32>
    %14 = vector.broadcast %1 : vector<8x1xi32> to vector<8x32xi32>
    %15 = arith.cmpi eq, %13, %14 : vector<8x32xi32>
    %cst_5 = arith.constant 0.000000e+00 : f32
    %16 = vector.broadcast %cst_5 : f32 to vector<8x32xf32>
    %17 = arith.select %15, %0, %16 : vector<8x32xi1>, vector<8x32xf32>
    %cst_6 = arith.constant dense<0.000000e+00> : vector<8xf32>
    %18 = vector.multi_reduction <add>, %17, %cst_6 [1] : vector<8x32xf32> to vector<8xf32>
    %19 = vector.shape_cast %18 : vector<8xf32> to vector<8x1xf32>
    %cst_7 = arith.constant 0.899999976 : f32
    %20 = vector.broadcast %cst_7 : f32 to vector<8x1xf32>
    %21 = arith.mulf %20, %19 : vector<8x1xf32>
    %22 = arith.subf %10, %21 : vector<8x1xf32>
    %cst_8 = arith.constant 3.125000e-03 : f32
    %23 = vector.broadcast %cst_8 : f32 to vector<8x1xf32>
    %24 = arith.mulf %23, %12 : vector<8x1xf32>
    %25 = arith.subf %22, %24 : vector<8x1xf32>
    %c8_i32 = arith.constant 8 : i32
    %26 = arith.muli %arg0, %c8_i32 : i32
    %27 = tpu.iota {dimensions = array<i32: 0>} : vector<8x1xi32>
    %28 = vector.broadcast %26 : i32 to vector<8x1xi32>
    %29 = arith.addi %27, %28 : vector<8x1xi32>
    %c8_i32_9 = arith.constant 8 : i32
    %30 = vector.broadcast %c8_i32_9 : i32 to vector<8x1xi32>
    %31 = arith.cmpi slt, %29, %30 : vector<8x1xi32>
    %cst_10 = arith.constant 0.000000e+00 : f32
    %32 = vector.broadcast %cst_10 : f32 to vector<8x1xf32>
    %33 = arith.select %31, %25, %32 : vector<8x1xi1>, vector<8x1xf32>
    %34 = vector.shape_cast %33 : vector<8x1xf32> to vector<1x8x1xf32>
    %cst_11 = arith.constant dense<0.000000e+00> : vector<1xf32>
    %35 = vector.multi_reduction <add>, %34, %cst_11 [1, 2] : vector<1x8x1xf32> to vector<1xf32>
    %36 = vector.shape_cast %35 : vector<1xf32> to vector<1x1x1xf32>
    %37 = vector.extract %36[0, 0, 0] : f32 from vector<1x1x1xf32>
    %38 = vector.broadcast %37 : f32 to vector<1x128xf32>
    %c0_12 = arith.constant 0 : index
    %c0_13 = arith.constant 0 : index
    %39 = vector.load %arg3[%c0_12, %c0_13] : memref<1x128xf32, #tpu.memory_space<vmem>>, vector<1x128xf32>
    tpu.vector_store %arg3[%c0_12, %c0_13], %38 {strides = array<i32>} : memref<1x128xf32, #tpu.memory_space<vmem>>, vector<1x128xf32>,
    return
  }
  func.func @transform_0(%arg0: i32) -> (i32, i32) {
    %c0_i32 = arith.constant 0 : i32
    %c0_i32_0 = arith.constant 0 : i32
    return %arg0, %c0_i32 : i32, i32
  }
  func.func @transform_1(%arg0: i32) -> (i32, i32) {
    %c0_i32 = arith.constant 0 : i32
    %c0_i32_0 = arith.constant 0 : i32
    return %arg0, %c0_i32 : i32, i32
  }
  func.func @transform_2(%arg0: i32) -> (i32, i32) {
    %c0_i32 = arith.constant 0 : i32
    %c0_i32_0 = arith.constant 0 : i32
    return %arg0, %c0_i32 : i32, i32
  }
}

</mosaic_0001>

<llo_original>
// kernel: tpu_custom_call.1
$region0: #{tpu_custom_call.1}
  #allocation0 [shape = 'u32[]', space=smem, size = 0x4, offset = 0x4, fixed_abs, tag = 'smem constant byte address 0x4 - core index']
  #allocation1 [shape = 'u32[144,128]{1,0:T(1,128)}', space=vmem, size = 0x12000, scoped, tag = 'internal scratch']
  %s0 = inlined_call_operand.vmem [shape: f32[8,32], index: 0, kind: input, shape index: {}]
  %s1 = inlined_call_operand.vmem [shape: s32[8,1], index: 1, kind: input, shape index: {}]
  %s2 = inlined_call_operand.hbm [shape: f32[1,128], index: 2, kind: output, shape index: {}]
  %s3 = sld [smem:[#allocation0]]
  $region18: #{tpu_custom_call.1} parent=0
    _
  %s5 = ssub.s32 1, %s3
  %s6 = scalar_select 0, %s5, %s3
  $region1: #{tpu_custom_call.1} parent=0
    #allocation2 [shape = 'u8[512]{0}', space=vmem, size = 0x400, scoped, tag = 'output window, operand 0, single buffered']
    #allocation3 [shape = 's32[1]{0}', space=sflag, size = 0x4, scoped, tag = 'scoped memory for tpu_custom_call.1']
    %7 = vsyncpa [#allocation3], 0
    // Predicated region
    $region2: #{tpu_custom_call.1} parent=1 // pred_check
      _
    $region3: #{tpu_custom_call.1} parent=1 // pred_check_branch
      %9 = sbr.rel (0) target = $region5
    $region4: #{tpu_custom_call.1} parent=1 // pred_region
      _
    $region5: #{tpu_custom_call.1} parent=1 // pred_fallthru
      _
    // Predicated region
    $region6: #{tpu_custom_call.1} parent=1 // pred_check
      _
    $region7: #{tpu_custom_call.1} parent=1 // pred_check_branch
      %11 = sbr.rel (0) target = $region9
    $region8: #{tpu_custom_call.1} parent=1 // pred_region
      _
    $region9: #{tpu_custom_call.1} parent=1 // pred_fallthru
      _
    %v12 = vld [vmem:[%s0] sm:$0xff]
    %v13 = vld [vmem:[%s1] sm:$0xff]
    %vm14 = vcmask 261120
    %v15 = vsel %vm14, %v12, -inf
    %16 = vmax.xlane.f32.xlu0 %v15
    %v17 = vpop.xlane.xlu0 %16
    %v18 = vsub.f32 %v12, %v17
    %v19 = vmul.f32 %v18, 1.442695
    %v20 = vpow.pop %v19
    %v21 = vsel %vm14, %v20, 0.0
    %22 = vadd.xlane.f32.xlu0 %v21
    %v23 = vpop.xlane.xlu0 %22
    %v24 = vlog2.pop %v23
    %v25 = vmul.f32 %v24, 0.6931472
    %v26 = vadd.f32 %v17, %v25
    %v27 = vsel %vm14, %v12, 0.0
    %28 = vadd.xlane.f32.xlu0 %v27
    %v29 = vpop.xlane.xlu0 %28
    %v30 = vlaneseq
    %v31 = vand.u32 %v30, 127
    %32 = vset.pattern.permute.xlu0 0
    %33 = vperm.xlu0 %32, %v13
    %v34 = vpop.permute.xlu0 %33
    %vm35 = vcmp.eq.s32.totalorder %v31, %v34
    %v36 = vsel %vm35, %v12, 0.0
    %v37 = vsel %vm14, %v36, 0.0
    %38 = vadd.xlane.f32.xlu0 %v37
    %v39 = vpop.xlane.xlu0 %38
    %v40 = vmul.f32 %v39, 0.9
    %v41 = vsub.f32 %v26, %v40
    %v42 = vmul.f32 %v29, 0.003125
    %v43 = vsub.f32 %v41, %v42
    %s44 = smul.u32 0, 8
    %v45 = vlaneseq
    %v46 = vshrl.u32 %v45, 7
    %v47 = vstv %s44
    %v48 = vadd.s32 %v46, %v47
    %vm49 = vcmp.lt.s32.totalorder %v48, 8
    %v50 = vsel %vm49, %v43, 0.0
    %vm51 = vcmask 7168
    %v52 = vsel %vm51, %v50, 0.0
    %53 = vadd.xlane.f32.xlu0 %v52
    %v54 = vpop.xlane.xlu0 %53
    %v55 = vrot.slane %v54, 4
    %v56 = vadd.f32 %v54, %v55
    %v57 = vrot.slane %v56, 2
    %v58 = vadd.f32 %v56, %v57
    %v59 = vrot.slane %v58, 1
    %v60 = vadd.f32 %v58, %v59
    %s61 = vtos %v60
    %v62 = vstv %s61
    %63 = vst [vmem:[#allocation2] sm:$0x1] %v62
    // Predicated region
    $region10: #{tpu_custom_call.1} parent=1 // pred_check
      _
    $region11: #{tpu_custom_call.1} parent=1 // pred_check_branch
      %65 = sbr.rel (0) target = $region13
    $region12: #{tpu_custom_call.1} parent=1 // pred_region
      %s67 = ssub.s32 16, 16
      %68 = vsyncadd [#allocation3], %s67
      %s70 = sshll.u32 [#allocation2], 4
      %s71 = int_to_ptr.vmem [resolvable:$true] %s70
      %73 = dma.vmem_to_hbm [thread:$0]  %s71, 16, %s2, [#allocation3]
    $region13: #{tpu_custom_call.1} parent=1 // pred_fallthru
      _
    // Predicated region
    $region14: #{tpu_custom_call.1} parent=1 // pred_check
      _
    $region15: #{tpu_custom_call.1} parent=1 // pred_check_branch
      %75 = sbr.rel (0) target = $region17
    $region16: #{tpu_custom_call.1} parent=1 // pred_region
      %76 = dma.done [#allocation3], 16
    $region17: #{tpu_custom_call.1} parent=1 // pred_fallthru
      _
    %77 = vsyncpa [#allocation3], 1

</llo_original>
